<compile_context>
chip_gen: v7x
topology: tpu7x:2x2x1
jax: 0.10.0
libtpu: 0.0.40
codegen_flags: <defaults>
</compile_context>

<pallas_src>
import jax
import jax.numpy as jnp
from jax import lax
from jax.experimental import pallas as pl
from jax.experimental.pallas import tpu as pltpu


def _round_up(x, m):
    return ((x + m - 1) // m) * m


def _self_attention_kernel(x_ref, w_ref, b_ref, out_ref, *attn_refs):
    bt, s, d = x_ref.shape
    hp = w_ref.shape[1] // 3          # 128-padded per-segment width
    h = out_ref.shape[-1]             # true hidden width

    # Fused QKV projection: one (Bt*S, D) @ (D, 3*Hp) MXU pass, f32 accumulate.
    x2 = x_ref[...].reshape(bt * s, d)
    qkv = jnp.dot(x2, w_ref[...], preferred_element_type=jnp.float32)
    qkv = (qkv + b_ref[...].astype(jnp.float32)).reshape(bt, s, 3 * hp)

    scale = 1.0 / (h ** 0.5)
    # 128-aligned lane slices (segments padded to Hp in the wrapper).  Cast
    # back to the input dtype so the S x S matmuls take native (bf16) operands
    # (single MXU pass); accumulation stays f32 via preferred_element_type.
    q = (qkv[:, :, 0:h] * scale).astype(x_ref.dtype)          # scale q, not scores
    k = qkv[:, :, hp:hp + h].astype(x_ref.dtype)
    v = qkv[:, :, 2 * hp:2 * hp + h].astype(x_ref.dtype)

    # Batched q @ k^T expressed as a contraction (no explicit transpose of k).
    scores = lax.dot_general(
        q, k,
        dimension_numbers=(((2,), (2,)), ((0,), (0,))),
        preferred_element_type=jnp.float32)                    # (Bt, S, S) f32

    # Numerically stable softmax (f32 elementwise).  Exact divide: returned
    # attention rows sum to 1 for callers that use them as probabilities.
    m = jnp.max(scores, axis=-1, keepdims=True)
    p = jnp.exp(scores - m)
    denom = jnp.sum(p, axis=-1, keepdims=True)
    attn = p / denom

    # Weighted sum: batched attn @ v with native-dtype operands.
    out = lax.dot_general(
        attn.astype(v.dtype), v,
        dimension_numbers=(((2,), (1,)), ((0,), (0,))),
        preferred_element_type=jnp.float32)                    # (Bt, S, H)

    out_ref[...] = out.astype(out_ref.dtype)
    if attn_refs:                                              # optional output
        attn_refs[0][...] = attn.astype(attn_refs[0].dtype)


def self_attention(x, wq, bq, wk, bk, wv, bv, *, block_b=None, return_attn=True):
    """x: (B, S, D); wq/wk/wv: (D, H) (already transposed); bq/bk/bv: (H,).

    Returns (out, attn) like the PyTorch module; with return_attn=False only
    `out` is returned and the O(S^2) attention writeback is dropped.
    No masking (causal/padding) is applied, matching the reference module.
    """
    B, S, D = x.shape
    H = wq.shape[1]
    Hp = _round_up(H, 128)  # 128-align each Q/K/V segment -> free lane slices

    def _pad_w(w):
        return jnp.pad(w, ((0, 0), (0, Hp - H))) if Hp != H else w

    def _pad_b(b_):
        return jnp.pad(b_, (0, Hp - H)) if Hp != H else b_

    w = jnp.concatenate([_pad_w(wq), _pad_w(wk), _pad_w(wv)], axis=1)   # (D, 3*Hp)
    b = jnp.concatenate([_pad_b(bq), _pad_b(bk), _pad_b(bv)], axis=0)
    b = b.reshape(1, 3 * Hp)

    itemsize = jnp.dtype(x.dtype).itemsize

    def footprint(bt):
        m = bt * S
        f = 2 * m * D * itemsize                          # x tile (double-buffered)
        f += (D * 3 * Hp + 3 * Hp) * itemsize             # weight + bias (single-buffered)
        f += 2 * m * H * itemsize                         # out tile (double-buffered)
        if return_attn:
            f += 2 * bt * S * S * itemsize                # attn tile (double-buffered)
        f += m * 3 * Hp * 4                               # qkv f32 intermediate
        f += 3 * bt * S * S * 4                           # scores / p / attn f32
        f += m * H * 4                                    # out f32
        return f

    if block_b is None:
        # Target M = Bt*S near 128, but keep >= 2 grid steps whenever B >= 2
        # (software pipelining; both TensorCores on v7x), and fit ~48 MiB.
        bt = max(1, min(B, 128 // max(S, 1)))
        if B >= 2:
            bt = min(bt, max(1, B // 2))
        while B % bt != 0:
            bt -= 1
        budget = 48 * 1024 * 1024
        while bt > 1 and footprint(bt) > budget:
            bt -= 1
            while B % bt != 0:
                bt -= 1
        block_b = bt

    grid = (B // block_b,)
    vmem_limit = int(min(max(2 * footprint(block_b), 32 * 1024 * 1024),
                         64 * 1024 * 1024))

    in_specs = [
        pl.BlockSpec((block_b, S, D), lambda i: (i, 0, 0)),
        # Constant-index operands: single-buffer them to save VMEM.
        pl.BlockSpec((D, 3 * Hp), lambda i: (0, 0), pipeline_mode=pl.Buffered(1)),
        pl.BlockSpec((1, 3 * Hp), lambda i: (0, 0), pipeline_mode=pl.Buffered(1)),
    ]
    out_spec_main = pl.BlockSpec((block_b, S, H), lambda i: (i, 0, 0))
    if return_attn:
        out_shape = (
            jax.ShapeDtypeStruct((B, S, H), x.dtype),
            jax.ShapeDtypeStruct((B, S, S), x.dtype),
        )
        out_specs = [
            out_spec_main,
            pl.BlockSpec((block_b, S, S), lambda i: (i, 0, 0)),
        ]
    else:
        out_shape = jax.ShapeDtypeStruct((B, S, H), x.dtype)
        out_specs = out_spec_main

    return pl.pallas_call(
        _self_attention_kernel,
        out_shape=out_shape,
        grid_spec=pltpu.PrefetchScalarGridSpec(
            num_scalar_prefetch=0,
            grid=grid,
            in_specs=in_specs,
            out_specs=out_specs,
        ),
        compiler_params=pltpu.CompilerParams(
            dimension_semantics=("parallel",),
            vmem_limit_bytes=vmem_limit),
    )(x, w, b)


def _reference(x, wq, bq, wk, bk, wv, bv):
    q = x @ wq + bq
    k = x @ wk + bk
    v = x @ wv + bv
    scale = 1.0 / (q.shape[-1] ** 0.5)
    scores = scale * jnp.einsum("bsh,bth->bst", q, k)
    attn = jax.nn.softmax(scores, axis=-1)
    out = jnp.einsum("bst,bth->bsh", attn, v)
    return out, attn


if __name__ == "__main__":
    B, S, D_in, H = 2, 8, 32, 32

    key = jax.random.PRNGKey(0)
    kx, kq, kbq, kk, kbk, kv, kbv = jax.random.split(key, 7)

    x = jax.random.normal(kx, (B, S, D_in), dtype=jnp.float32)

    # nn.Linear(input_dim, hidden_dim): weight (H, D_in), bias (H,).
    # Pre-transpose weights to (D_in, H) for x @ W.
    lim = 1.0 / (D_in ** 0.5)
    wq = jax.random.uniform(kq, (D_in, H), minval=-lim, maxval=lim, dtype=jnp.float32)
    wk = jax.random.uniform(kk, (D_in, H), minval=-lim, maxval=lim, dtype=jnp.float32)
    wv = jax.random.uniform(kv, (D_in, H), minval=-lim, maxval=lim, dtype=jnp.float32)
    bq = jax.random.uniform(kbq, (H,), minval=-lim, maxval=lim, dtype=jnp.float32)
    bk = jax.random.uniform(kbk, (H,), minval=-lim, maxval=lim, dtype=jnp.float32)
    bv = jax.random.uniform(kbv, (H,), minval=-lim, maxval=lim, dtype=jnp.float32)

    ref_out, ref_attn = _reference(x, wq, bq, wk, bk, wv, bv)

    # Default path: matches the PyTorch module (returns weighted sum + weights).
    out, attn = self_attention(x, wq, bq, wk, bk, wv, bv)
    out = jax.block_until_ready(out)
    attn = jax.block_until_ready(attn)
    assert out.shape == (B, S, H) and attn.shape == (B, S, S)
    assert jnp.allclose(out, ref_out, atol=2e-3, rtol=2e-3)
    assert jnp.allclose(attn, ref_attn, atol=2e-3, rtol=2e-3)

    # Output-only path: drops the O(S^2) attention HBM writeback.
    out_only = self_attention(x, wq, bq, wk, bk, wv, bv, return_attn=False)
    out_only = jax.block_until_ready(out_only)
    assert jnp.allclose(out_only, ref_out, atol=2e-3, rtol=2e-3)

    # bf16 path: native-dtype matmul operands (single-pass MXU), f32 accumulate.
    cast = lambda a: a.astype(jnp.bfloat16)
    out_b, attn_b = self_attention(cast(x), cast(wq), cast(bq), cast(wk),
                                   cast(bk), cast(wv), cast(bv))
    out_b = jax.block_until_ready(out_b)
    attn_b = jax.block_until_ready(attn_b)
    assert jnp.allclose(out_b.astype(jnp.float32), ref_out, atol=5e-2, rtol=5e-2)
    assert jnp.allclose(attn_b.astype(jnp.float32), ref_attn, atol=5e-2, rtol=5e-2)

    print("KERNEL_OK")
</pallas_src>

<mosaic_0001>
module attributes {stable_mosaic.version = 11 : i64} {
  func.func @_self_attention_kernel(%arg0: i32, %arg1: memref<1x8x32xf32, #tpu.memory_space<vmem>>, %arg2: memref<32x384xf32, #tpu.memory_space<vmem>>, %arg3: memref<1x384xf32, #tpu.memory_space<vmem>>, %arg4: memref<1x8x32xf32, #tpu.memory_space<vmem>>, %arg5: memref<1x8x8xf32, #tpu.memory_space<vmem>>) attributes {dimension_semantics = [#tpu.dimension_semantics<parallel>], iteration_bounds = array<i64: 2>, scalar_prefetch = 0 : i64, scratch_operands = 0 : i64, tpu.core_type = #tpu.core_type<tc>, window_params = [{transform_indices = @transform_0, window_bounds = array<i64: 1, 8, 32>}, {pipeline_mode = #tpu.pipeline_mode<synchronous>, transform_indices = @transform_1, window_bounds = array<i64: 32, 384>}, {pipeline_mode = #tpu.pipeline_mode<synchronous>, transform_indices = @transform_2, window_bounds = array<i64: 1, 384>}, {transform_indices = @transform_3, window_bounds = array<i64: 1, 8, 32>}, {transform_indices = @transform_4, window_bounds = array<i64: 1, 8, 8>}]} {
    %c0 = arith.constant 0 : index
    %c0_0 = arith.constant 0 : index
    %c0_1 = arith.constant 0 : index
    %0 = vector.load %arg1[%c0, %c0_0, %c0_1] : memref<1x8x32xf32, #tpu.memory_space<vmem>>, vector<1x8x32xf32>
    %1 = vector.shape_cast %0 : vector<1x8x32xf32> to vector<8x32xf32>
    %c0_2 = arith.constant 0 : index
    %c0_3 = arith.constant 0 : index
    %2 = vector.load %arg2[%c0_2, %c0_3] : memref<32x384xf32, #tpu.memory_space<vmem>>, vector<32x384xf32>
    %cst = arith.constant dense<0.000000e+00> : vector<8x384xf32>
    %3 = tpu.matmul %1, %2, %cst {dimension_numbers = #tpu.dot_dimension_numbers<[1], [0], [0], [1], [0, 0, 1, 1], [], []>} : vector<8x32xf32>, vector<32x384xf32>, vector<8x384xf32> -> vector<8x384xf32>
    %c0_4 = arith.constant 0 : index
    %c0_5 = arith.constant 0 : index
    %4 = vector.load %arg3[%c0_4, %c0_5] : memref<1x384xf32, #tpu.memory_space<vmem>>, vector<1x384xf32>
    %5 = vector.broadcast %4 : vector<1x384xf32> to vector<8x384xf32>
    %6 = arith.addf %3, %5 : vector<8x384xf32>
    %7 = vector.shape_cast %6 : vector<8x384xf32> to vector<1x8x384xf32>
    %8 = vector.extract_strided_slice %7 {offsets = [0, 0, 0], sizes = [1, 8, 32], strides = [1, 1, 1]} : vector<1x8x384xf32> to vector<1x8x32xf32>
    %cst_6 = arith.constant 0.176776692 : f32
    %9 = vector.broadcast %cst_6 : f32 to vector<1x8x32xf32>
    %10 = arith.mulf %8, %9 : vector<1x8x32xf32>
    %11 = vector.extract_strided_slice %7 {offsets = [0, 0, 128], sizes = [1, 8, 32], strides = [1, 1, 1]} : vector<1x8x384xf32> to vector<1x8x32xf32>
    %12 = vector.extract_strided_slice %7 {offsets = [0, 0, 256], sizes = [1, 8, 32], strides = [1, 1, 1]} : vector<1x8x384xf32> to vector<1x8x32xf32>
    %cst_7 = arith.constant dense<0.000000e+00> : vector<1x8x8xf32>
    %13 = tpu.matmul %10, %11, %cst_7 {dimension_numbers = #tpu.dot_dimension_numbers<[2], [2], [1], [1], [0, 0, 0, 1, 1, 1], [0], [0]>} : vector<1x8x32xf32>, vector<1x8x32xf32>, vector<1x8x8xf32> -> vector<1x8x8xf32>
    %cst_8 = arith.constant dense<0xFF800000> : vector<1x8xf32>
    %14 = vector.multi_reduction <maximumf>, %13, %cst_8 [2] : vector<1x8x8xf32> to vector<1x8xf32>
    %15 = vector.shape_cast %14 : vector<1x8xf32> to vector<1x8x1xf32>
    %16 = vector.broadcast %15 : vector<1x8x1xf32> to vector<1x8x8xf32>
    %17 = arith.subf %13, %16 : vector<1x8x8xf32>
    %18 = math.exp %17 : vector<1x8x8xf32>
    %cst_9 = arith.constant dense<0.000000e+00> : vector<1x8xf32>
    %19 = vector.multi_reduction <add>, %18, %cst_9 [2] : vector<1x8x8xf32> to vector<1x8xf32>
    %20 = vector.shape_cast %19 : vector<1x8xf32> to vector<1x8x1xf32>
    %21 = vector.broadcast %20 : vector<1x8x1xf32> to vector<1x8x8xf32>
    %22 = arith.divf %18, %21 : vector<1x8x8xf32>
    %cst_10 = arith.constant dense<0.000000e+00> : vector<1x8x32xf32>
    %23 = tpu.matmul %22, %12, %cst_10 {dimension_numbers = #tpu.dot_dimension_numbers<[2], [1], [1], [2], [0, 0, 0, 1, 1, 2], [0], [0]>} : vector<1x8x8xf32>, vector<1x8x32xf32>, vector<1x8x32xf32> -> vector<1x8x32xf32>
    %c0_11 = arith.constant 0 : index
    %c0_12 = arith.constant 0 : index
    %c0_13 = arith.constant 0 : index
    %24 = vector.load %arg4[%c0_11, %c0_12, %c0_13] : memref<1x8x32xf32, #tpu.memory_space<vmem>>, vector<1x8x32xf32>
    tpu.vector_store %arg4[%c0_11, %c0_12, %c0_13], %23 {strides = array<i32>} : memref<1x8x32xf32, #tpu.memory_space<vmem>>, vector<1x8x32xf32>,
    %c0_14 = arith.constant 0 : index
    %c0_15 = arith.constant 0 : index
    %c0_16 = arith.constant 0 : index
    %25 = vector.load %arg5[%c0_14, %c0_15, %c0_16] : memref<1x8x8xf32, #tpu.memory_space<vmem>>, vector<1x8x8xf32>
    tpu.vector_store %arg5[%c0_14, %c0_15, %c0_16], %22 {strides = array<i32>} : memref<1x8x8xf32, #tpu.memory_space<vmem>>, vector<1x8x8xf32>,
    return
  }
  func.func @transform_0(%arg0: i32) -> (i32, i32, i32) {
    %c0_i32 = arith.constant 0 : i32
    %c0_i32_0 = arith.constant 0 : i32
    %c0_i32_1 = arith.constant 0 : i32
    return %arg0, %c0_i32, %c0_i32_0 : i32, i32, i32
  }
  func.func @transform_1(%arg0: i32) -> (i32, i32) {
    %c0_i32 = arith.constant 0 : i32
    %c0_i32_0 = arith.constant 0 : i32
    %c0_i32_1 = arith.constant 0 : i32
    return %c0_i32, %c0_i32_0 : i32, i32
  }
  func.func @transform_2(%arg0: i32) -> (i32, i32) {
    %c0_i32 = arith.constant 0 : i32
    %c0_i32_0 = arith.constant 0 : i32
    %c0_i32_1 = arith.constant 0 : i32
    return %c0_i32, %c0_i32_0 : i32, i32
  }
  func.func @transform_3(%arg0: i32) -> (i32, i32, i32) {
    %c0_i32 = arith.constant 0 : i32
    %c0_i32_0 = arith.constant 0 : i32
    %c0_i32_1 = arith.constant 0 : i32
    return %arg0, %c0_i32, %c0_i32_0 : i32, i32, i32
  }
  func.func @transform_4(%arg0: i32) -> (i32, i32, i32) {
    %c0_i32 = arith.constant 0 : i32
    %c0_i32_0 = arith.constant 0 : i32
    %c0_i32_1 = arith.constant 0 : i32
    return %arg0, %c0_i32, %c0_i32_0 : i32, i32, i32
  }
}

</mosaic_0001>

<llo_original>
// kernel: tpu_custom_call.1
$region0: #{tpu_custom_call.1}
  #allocation0 [shape = 'u32[]', space=smem, size = 0x4, offset = 0x4, fixed_abs, tag = 'smem constant byte address 0x4 - core index']
  #allocation1 [shape = 'u32[144,128]{1,0:T(1,128)}', space=vmem, size = 0x12000, scoped, tag = 'internal scratch']
  %s0 = inlined_call_operand.hbm [shape: f32[2,8,32], index: 0, kind: input, shape index: {}]
  %s1 = inlined_call_operand.hbm [shape: f32[32,384], index: 1, kind: input, shape index: {}]
  %s2 = inlined_call_operand.vmem [shape: f32[1,384], index: 2, kind: input, shape index: {}]
  %s3 = inlined_call_operand.hbm [shape: f32[2,8,32], index: 3, kind: output, shape index: {0}]
  %s4 = inlined_call_operand.hbm [shape: f32[2,8,8], index: 4, kind: output, shape index: {1}]
  %5 = xla_tuple %s3, %s4
  %s6 = sld [smem:[#allocation0]]
  $region61: #{tpu_custom_call.1} parent=0
    _
  %s8 = ssub.s32 1, %s6
  %s9 = scalar_select 0, %s8, %s6
  $region1: #{tpu_custom_call.1} parent=0
    #allocation2 [shape = 'u8[8192]{0}', space=vmem, size = 0x2000, scoped, tag = 'input window, operand 0']
    #allocation3 [shape = 's32[2]{0}', space=sflag, size = 0x8, scoped, tag = 'scoped memory for tpu_custom_call.1']
    #allocation4 [shape = 's32[2]{0}', space=sflag, size = 0x8, scoped, tag = 'scoped memory for tpu_custom_call.1']
    #allocation5 [shape = 'u8[49152]{0}', space=vmem, size = 0xc000, scoped, tag = 'input window, operand 1, single buffered']
    #allocation6 [shape = 's32[1]{0}', space=sflag, size = 0x4, scoped, tag = 'scoped memory for tpu_custom_call.1']
    #allocation7 [shape = 'u8[8192]{0}', space=vmem, size = 0x2000, scoped, tag = 'output window, operand 0']
    #allocation8 [shape = 'u8[8192]{0}', space=vmem, size = 0x2000, scoped, tag = 'output window, operand 1']
    #allocation9 [shape = 's32[2]{0}', space=sflag, size = 0x8, scoped, tag = 'scoped memory for tpu_custom_call.1']
    %10 = vsyncpa [#allocation3], 0
    %s11 = scalar_lea.sflag [#allocation3], 1
    %12 = vsyncpa %s11, 0
    %13 = vsyncpa [#allocation6], 0
    %14 = vsyncpa [#allocation4], 0
    %s15 = scalar_lea.sflag [#allocation4], 1
    %16 = vsyncpa %s15, 0
    %17 = vsyncpa [#allocation9], 0
    %s18 = scalar_lea.sflag [#allocation9], 1
    %19 = vsyncpa %s18, 0
    loop: start=0, step=1, limit=4
    $region2: #{tpu_custom_call.1} parent=1 // loop_pre_header
      _
    $region3: #{tpu_custom_call.1} parent=1 // loop_header
      %s21 = sphi 0, %s25
      %p22 = scmp.ge.s32.totalorder %s21, 4
      %s31 = sphi 0, %s33
      %s34 = sphi 0, %s31
      %s35 = sphi 0, %s34
      %s51 = sphi 0, %s35
      %s55 = sphi 0, %s55
      %s57 = sphi 0, %s55
      %s58 = sphi 0, %s57
      %s72 = sphi 0, %s58
      %s76 = sphi 0, %s76
      %s78 = sphi 0, %s76
      %s79 = sphi 0, %s78
      %s93 = sphi 0, %s79
      %s99 = sphi 0, %s101
      %s102 = sphi 0, %s99
      %s103 = sphi 0, %s102
      %s119 = sphi 0, %s103
      %s125 = sphi 0, %s127
      %s128 = sphi 0, %s125
      %s129 = sphi 0, %s128
      %s145 = sphi 0, %s129
    $region4: #{tpu_custom_call.1} parent=1 // loop_header_branch
      %24 = sbr.rel (%p22) target = $region8
    $region5: #{tpu_custom_call.1} parent=1 // loop_body
      %s26 = ssub.s32 %s21, 1
      %s27 = ssub.s32 %s21, 2
      %s28 = sadd.s32 %s21, 1
      %s29 = ssub.s32 %s21, %s28
      %p30 = scmp.eq.s32.totalorder %s29, 0
      %s32 = sadd.s32 %s31, 1
      %s33 = scalar_select %p30, %s31, %s32
      %p36 = pneg %p30
      %p37 = scmp.eq.s32.totalorder %s21, 1
      %p38 = por %p36, %p37
      %p39 = scmp.ne.s32.totalorder %s31, %s34
      %p40 = scmp.eq.s32.totalorder %s21, 0
      %p41 = por %p39, %p40
      %p42 = scmp.ne.s32.totalorder %s31, %s34
      %p43 = scmp.eq.s32.totalorder %s26, 1
      %p44 = por %p42, %p43
      %p45 = scmp.ne.s32.totalorder %s34, %s35
      %p46 = scmp.eq.s32.totalorder %s26, 0
      %p47 = por %p45, %p46
      %p48 = scmp.ne.s32.totalorder %s34, %s35
      %p49 = scmp.eq.s32.totalorder %s27, 1
      %p50 = por %p48, %p49
      %p52 = scmp.ne.s32.totalorder %s35, %s51
      %p53 = scmp.eq.s32.totalorder %s27, 0
      %p54 = por %p52, %p53
      %s56 = sadd.s32 %s55, 1
      %p59 = scmp.eq.s32.totalorder %s21, 1
      %p60 = scmp.ne.s32.totalorder %s55, %s57
      %p61 = scmp.eq.s32.totalorder %s21, 0
      %p62 = por %p60, %p61
      %p63 = scmp.ne.s32.totalorder %s55, %s57
      %p64 = scmp.eq.s32.totalorder %s26, 1
      %p65 = por %p63, %p64
      %p66 = scmp.ne.s32.totalorder %s57, %s58
      %p67 = scmp.eq.s32.totalorder %s26, 0
      %p68 = por %p66, %p67
      %p69 = scmp.ne.s32.totalorder %s57, %s58
      %p70 = scmp.eq.s32.totalorder %s27, 1
      %p71 = por %p69, %p70
      %p73 = scmp.ne.s32.totalorder %s58, %s72
      %p74 = scmp.eq.s32.totalorder %s27, 0
      %p75 = por %p73, %p74
      %s77 = sadd.s32 %s76, 1
      %p80 = scmp.eq.s32.totalorder %s21, 1
      %p81 = scmp.ne.s32.totalorder %s76, %s78
      %p82 = scmp.eq.s32.totalorder %s21, 0
      %p83 = por %p81, %p82
      %p84 = scmp.ne.s32.totalorder %s76, %s78
      %p85 = scmp.eq.s32.totalorder %s26, 1
      %p86 = por %p84, %p85
      %p87 = scmp.ne.s32.totalorder %s78, %s79
      %p88 = scmp.eq.s32.totalorder %s26, 0
      %p89 = por %p87, %p88
      %p90 = scmp.ne.s32.totalorder %s78, %s79
      %p91 = scmp.eq.s32.totalorder %s27, 1
      %p92 = por %p90, %p91
      %p94 = scmp.ne.s32.totalorder %s79, %s93
      %p95 = scmp.eq.s32.totalorder %s27, 0
      %p96 = por %p94, %p95
      %s97 = ssub.s32 %s21, %s28
      %p98 = scmp.eq.s32.totalorder %s97, 0
      %s100 = sadd.s32 %s99, 1
      %s101 = scalar_select %p98, %s99, %s100
      %p104 = pneg %p98
      %p105 = scmp.eq.s32.totalorder %s21, 1
      %p106 = por %p104, %p105
      %p107 = scmp.ne.s32.totalorder %s99, %s102
      %p108 = scmp.eq.s32.totalorder %s21, 0
      %p109 = por %p107, %p108
      %p110 = scmp.ne.s32.totalorder %s99, %s102
      %p111 = scmp.eq.s32.totalorder %s26, 1
      %p112 = por %p110, %p111
      %p113 = scmp.ne.s32.totalorder %s102, %s103
      %p114 = scmp.eq.s32.totalorder %s26, 0
      %p115 = por %p113, %p114
      %p116 = scmp.ne.s32.totalorder %s102, %s103
      %p117 = scmp.eq.s32.totalorder %s27, 1
      %p118 = por %p116, %p117
      %p120 = scmp.ne.s32.totalorder %s103, %s119
      %p121 = scmp.eq.s32.totalorder %s27, 0
      %p122 = por %p120, %p121
      %s123 = ssub.s32 %s21, %s28
      %p124 = scmp.eq.s32.totalorder %s123, 0
      %s126 = sadd.s32 %s125, 1
      %s127 = scalar_select %p124, %s125, %s126
      %p130 = pneg %p124
      %p131 = scmp.eq.s32.totalorder %s21, 1
      %p132 = por %p130, %p131
      %p133 = scmp.ne.s32.totalorder %s125, %s128
      %p134 = scmp.eq.s32.totalorder %s21, 0
      %p135 = por %p133, %p134
      %p136 = scmp.ne.s32.totalorder %s125, %s128
      %p137 = scmp.eq.s32.totalorder %s26, 1
      %p138 = por %p136, %p137
      %p139 = scmp.ne.s32.totalorder %s128, %s129
      %p140 = scmp.eq.s32.totalorder %s26, 0
      %p141 = por %p139, %p140
      %p142 = scmp.ne.s32.totalorder %s128, %s129
      %p143 = scmp.eq.s32.totalorder %s27, 1
      %p144 = por %p142, %p143
      %p146 = scmp.ne.s32.totalorder %s129, %s145
      %p147 = scmp.eq.s32.totalorder %s27, 0
      %p148 = por %p146, %p147
      %p149 = scmp.le.s32.totalorder 1, %s21
      %p150 = scmp.lt.s32.totalorder %s21, 3
      %p151 = pnand %p149, %p150
      %p152 = pneg %p151
      // Predicated region
      $region9: #{tpu_custom_call.1} parent=5 // pred_check
        _
      $region10: #{tpu_custom_call.1} parent=5 // pred_check_branch
        %154 = sbr.rel (%p151) target = $region12
      $region11: #{tpu_custom_call.1} parent=5 // pred_region
        %s155 = ssub.s32 %s21, 1
        // Predicated region
        $region13: #{tpu_custom_call.1} parent=11 // pred_check
          %p156 = pneg %p68
        $region14: #{tpu_custom_call.1} parent=11 // pred_check_branch
          %158 = sbr.rel (%p156) target = $region16
        $region15: #{tpu_custom_call.1} parent=11 // pred_region
          %s160 = ssub.s32 1536, 1536
          %161 = vsyncadd [#allocation6], %s160
          %s162 = sshll.u32 [#allocation5], 4
          %s163 = int_to_ptr.vmem [resolvable:$true] %s162
          %168 = dma.hbm_to_vmem [thread:$0]  %s1, 1536, %s163, [#allocation6], 384, 384, 24
        $region16: #{tpu_custom_call.1} parent=11 // pred_fallthru
          _
        // Predicated region
        $region17: #{tpu_custom_call.1} parent=11 // pred_check
          %p169 = pneg %p89
        $region18: #{tpu_custom_call.1} parent=11 // pred_check_branch
          %171 = sbr.rel (%p169) target = $region20
        $region19: #{tpu_custom_call.1} parent=11 // pred_region
          _
        $region20: #{tpu_custom_call.1} parent=11 // pred_fallthru
          _
      $region12: #{tpu_custom_call.1} parent=5 // pred_fallthru
        _
      %p172 = scmp.lt.s32.totalorder %s21, 2
      // Predicated region
      $region21: #{tpu_custom_call.1} parent=5 // pred_check
        %p173 = pneg %p172
      $region22: #{tpu_custom_call.1} parent=5 // pred_check_branch
        %175 = sbr.rel (%p173) target = $region24
      $region23: #{tpu_custom_call.1} parent=5 // pred_region
        // Predicated region
        $region25: #{tpu_custom_call.1} parent=23 // pred_check
          %p176 = pneg %p41
        $region26: #{tpu_custom_call.1} parent=23 // pred_check_branch
          %178 = sbr.rel (%p176) target = $region28
        $region27: #{tpu_custom_call.1} parent=23 // pred_region
          %s179 = sand.u32 %s31, 1
          %s180 = scalar_lea.sflag [#allocation3], %s179
          %s181 = sand.u32 %s31, 1
          %s182 = smul.addr %s181, 8
          %s183 = scalar_lea.vmem [#allocation2], %s182
          %s185 = ssub.s32 128, 128
          %186 = vsyncadd %s180, %s185
          %s187 = smul.addr %s21, 128
          %s188 = scalar_lea.hbm %s0, %s187
          %s190 = sshll.u32 %s183, 4
          %s191 = int_to_ptr.vmem [resolvable:$true] %s190
          %193 = dma.hbm_to_vmem [thread:$0]  %s188, 128, %s191, %s180
        $region28: #{tpu_custom_call.1} parent=23 // pred_fallthru
          _
      $region24: #{tpu_custom_call.1} parent=5 // pred_fallthru
        _
      %p194 = scmp.le.s32.totalorder 1, %s21
      %p195 = scmp.lt.s32.totalorder %s21, 3
      %p196 = pnand %p194, %p195
      %p197 = pneg %p196
      // Predicated region
      $region29: #{tpu_custom_call.1} parent=5 // pred_check
        _
      $region30: #{tpu_custom_call.1} parent=5 // pred_check_branch
        %199 = sbr.rel (%p196) target = $region32
      $region31: #{tpu_custom_call.1} parent=5 // pred_region
        %s200 = ssub.s32 %s21, 1
        %s201 = sand.u32 %s34, 1
        %s202 = scalar_lea.sflag [#allocation3], %s201
        %s203 = sand.u32 %s34, 1
        %s204 = smul.addr %s203, 8
        %s205 = scalar_lea.vmem [#allocation2], %s204
        // Predicated region
        $region33: #{tpu_custom_call.1} parent=31 // pred_check
          %p206 = pneg %p47
        $region34: #{tpu_custom_call.1} parent=31 // pred_check_branch
          %208 = sbr.rel (%p206) target = $region36
        $region35: #{tpu_custom_call.1} parent=31 // pred_region
          %209 = dma.done %s202, 128
        $region36: #{tpu_custom_call.1} parent=31 // pred_fallthru
          _
        // Predicated region
        $region37: #{tpu_custom_call.1} parent=31 // pred_check
          %p210 = pneg %p68
        $region38: #{tpu_custom_call.1} parent=31 // pred_check_branch
          %212 = sbr.rel (%p210) target = $region40
        $region39: #{tpu_custom_call.1} parent=31 // pred_region
          %213 = dma.done [#allocation6], 1536
        $region40: #{tpu_custom_call.1} parent=31 // pred_fallthru
          _
        %s214 = sand.u32 %s34, 1
        %s215 = scalar_lea.sflag [#allocation3], %s214
        %s216 = sand.u32 %s34, 1
        %s217 = smul.addr %s216, 8
        %s218 = scalar_lea.vmem [#allocation2], %s217
        %p219 = pneg %p47
        %p220 = pneg %p44
        %p221 = pneg %p68
        %p222 = pneg %p65
        %p223 = pneg %p89
        %p224 = pneg %p86
        %p225 = pneg %p115
        %p226 = pneg %p112
        %s227 = sand.u32 %s102, 1
        %s228 = scalar_lea.sflag [#allocation4], %s227
        %s229 = sand.u32 %s102, 1
        %s230 = smul.addr %s229, 8
        %s231 = scalar_lea.vmem [#allocation7], %s230
        %p232 = pneg %p141
        %p233 = pneg %p138
        %s234 = sand.u32 %s128, 1
        %s235 = scalar_lea.sflag [#allocation9], %s234
        %s236 = sand.u32 %s128, 1
        %s237 = smul.addr %s236, 8
        %s238 = scalar_lea.vmem [#allocation8], %s237
        %v239 = vld [vmem:[%s205] sm:$0xff]
        %v240 = vld [vmem:[#allocation5] sm:$0xff]
        %v241 = vld [vmem:[#allocation5 + $0x8] sm:$0xff]
        %v242 = vld [vmem:[#allocation5 + $0x10] sm:$0xff]
        %v243 = vld [vmem:[#allocation5 + $0x18] sm:$0xff]
        %v244 = vld [vmem:[#allocation5 + $0x20] sm:$0xff]
        %v245 = vld [vmem:[#allocation5 + $0x28] sm:$0xff]
        %v246 = vld [vmem:[#allocation5 + $0x30] sm:$0xff]
        %v247 = vld [vmem:[#allocation5 + $0x38] sm:$0xff]
        %v248 = vld [vmem:[#allocation5 + $0x40] sm:$0xff]
        %v249 = vld [vmem:[#allocation5 + $0x48] sm:$0xff]
        %v250 = vld [vmem:[#allocation5 + $0x50] sm:$0xff]
        %v251 = vld [vmem:[#allocation5 + $0x58] sm:$0xff]
        %v252 = vld [vmem:[%s2] sm:$0x7]
        %v254 = vlaneseq
        %v255 = vshrl.u32 %v254, 7
        %v256 = vsub.s32 0, %v255
        %v257 = vrot.slane %v252, %v256
        %v258 = vlaneseq
        %v259 = vshrl.u32 %v258, 7
        %v260 = vsub.s32 1, %v259
        %v261 = vrot.slane %v252, %v260
        %v262 = vlaneseq
        %v263 = vshrl.u32 %v262, 7
        %v264 = vsub.s32 2, %v263
        %v265 = vrot.slane %v252, %v264
        %vm269 = vcmask 261120
        %v271 = vsel %vm269, %v239, 0
        %273 = vmatprep.subr.mxu0 %v241
        %274 = vmatpush1.msra.mxu0 %v240
        %275 = vmatprep.subr.mxu0 %v244
        %276 = vmatpush1.msra.mxu0 %v243
        %277 = vmatprep.subr.mxu0 %v247
        %278 = vmatpush1.msra.mxu0 %v246
        %279 = vmatprep.subr.mxu0 %v250
        %280 = vmatpush1.msra.mxu0 %v249
        %281 = vmatprep.subr.mxu0 0.0
        %282 = vmatpush1.msra.mxu0 0.0
        %283 = vmatprep.subr.mxu0 0.0
        %284 = vmatpush1.msra.mxu0 0.0
        %285 = vmatprep.subr.mxu0 0.0
        %286 = vmatpush1.msra.mxu0 0.0
        %287 = vmatprep.subr.mxu0 0.0
        %288 = vmatpush1.msra.mxu0 0.0
        %289 = vmatprep.subr.mxu0 0.0
        %290 = vmatpush1.msra.mxu0 0.0
        %291 = vmatprep.subr.mxu0 0.0
        %292 = vmatpush1.msra.mxu0 0.0
        %293 = vmatprep.subr.mxu0 0.0
        %294 = vmatpush1.msra.mxu0 0.0
        %295 = vmatprep.subr.mxu0 0.0
        %296 = vmatpush1.msra.mxu0 0.0
        %297 = vmatprep.subr.mxu0 0.0
        %298 = vmatpush1.msra.mxu0 0.0
        %299 = vmatprep.subr.mxu0 0.0
        %300 = vmatpush1.msra.mxu0 0.0
        %301 = vmatprep.subr.mxu0 0.0
        %302 = vmatpush1.msra.mxu0 0.0
        %303 = vmatprep.subr.mxu0 0.0
        %304 = vmatpush1.msra.mxu0 0.0
        %305 = vmatprep.subr.mxu0 0.0
        %306 = vmatpush1.msra.mxu0 0.0
        %307 = vmatprep.subr.mxu0 0.0
        %308 = vmatpush1.msra.mxu0 0.0
        %309 = vmatprep.subr.mxu0 0.0
        %310 = vmatpush1.msra.mxu0 0.0
        %311 = vmatprep.subr.mxu0 0.0
        %312 = vmatpush1.msra.mxu0 0.0
        %313 = vmatprep.subr.mxu0 0.0
        %314 = vmatpush1.msra.mxu0 0.0
        %315 = vmatprep.subr.mxu0 0.0
        %316 = vmatpush1.msra.mxu0 0.0
        %317 = vmatprep.subr.mxu0 0.0
        %318 = vmatpush1.msra.mxu0 0.0
        %319 = vmatprep.subr.mxu0 0.0
        %320 = vmatpush1.msra.mxu0 0.0
        %321 = vmatprep.subr.mxu0 0.0
        %322 = vmatpush1.msra.mxu0 0.0
        %323 = vmatprep.subr.mxu0 0.0
        %324 = vmatpush1.msra.mxu0 0.0
        %325 = vmatprep.subr.mxu0 0.0
        %326 = vmatpush1.msra.mxu0 0.0
        %327 = vmatprep.subr.mxu0 0.0
        %328 = vmatpush1.msra.mxu0 0.0
        %329 = vmatprep.subr.mxu0 0.0
        %330 = vmatpush1.msra.mxu0 0.0
        %331 = vmatprep.subr.mxu0 0.0
        %332 = vmatpush1.msra.mxu0 0.0
        %333 = vmatprep.subr.mxu0 0.0
        %334 = vmatpush1.msra.mxu0 0.0
        %335 = vmatprep.subr.mxu0 0.0
        %336 = vmatpush1.msra.mxu0 0.0
        %337 = vmatprep.mubr.f32.mxu0 0.0
        %338 = vmatmul.mubr.f32.gmra.mrb[0].mxu0 %v271
        %v339 = vpop.f32.mrb[0].mxu0
        %v340 = vadd.f32 %v257, %v339
        %v341 = vpop.f32.mrb[0].mxu0
        %v342 = vadd.f32 %v261, %v341
        %343 = vdwg.mxu0
        %344 = vmatprep.subr.mxu0 0.0
        %345 = vmatpush1.msra.mxu0 %v242
        %346 = vmatprep.subr.mxu0 0.0
        %347 = vmatpush1.msra.mxu0 %v245
        %348 = vmatprep.subr.mxu0 0.0
        %349 = vmatpush1.msra.mxu0 %v248
        %350 = vmatprep.subr.mxu0 0.0
        %351 = vmatpush1.msra.mxu0 %v251
        %352 = vmatprep.subr.mxu0 0.0
        %353 = vmatpush1.msra.mxu0 0.0
        %354 = vmatprep.subr.mxu0 0.0
        %355 = vmatpush1.msra.mxu0 0.0
        %356 = vmatprep.subr.mxu0 0.0
        %357 = vmatpush1.msra.mxu0 0.0
        %358 = vmatprep.subr.mxu0 0.0
        %359 = vmatpush1.msra.mxu0 0.0
        %360 = vmatprep.subr.mxu0 0.0
        %361 = vmatpush1.msra.mxu0 0.0
        %362 = vmatprep.subr.mxu0 0.0
        %363 = vmatpush1.msra.mxu0 0.0
        %364 = vmatprep.subr.mxu0 0.0
        %365 = vmatpush1.msra.mxu0 0.0
        %366 = vmatprep.subr.mxu0 0.0
        %367 = vmatpush1.msra.mxu0 0.0
        %368 = vmatprep.subr.mxu0 0.0
        %369 = vmatpush1.msra.mxu0 0.0
        %370 = vmatprep.subr.mxu0 0.0
        %371 = vmatpush1.msra.mxu0 0.0
        %372 = vmatprep.subr.mxu0 0.0
        %373 = vmatpush1.msra.mxu0 0.0
        %374 = vmatprep.subr.mxu0 0.0
        %375 = vmatpush1.msra.mxu0 0.0
        %376 = vmatprep.subr.mxu0 0.0
        %377 = vmatpush1.msra.mxu0 0.0
        %378 = vmatprep.subr.mxu0 0.0
        %379 = vmatpush1.msra.mxu0 0.0
        %380 = vmatprep.subr.mxu0 0.0
        %381 = vmatpush1.msra.mxu0 0.0
        %382 = vmatprep.subr.mxu0 0.0
        %383 = vmatpush1.msra.mxu0 0.0
        %384 = vmatprep.subr.mxu0 0.0
        %385 = vmatpush1.msra.mxu0 0.0
        %386 = vmatprep.subr.mxu0 0.0
        %387 = vmatpush1.msra.mxu0 0.0
        %388 = vmatprep.subr.mxu0 0.0
        %389 = vmatpush1.msra.mxu0 0.0
        %390 = vmatprep.subr.mxu0 0.0
        %391 = vmatpush1.msra.mxu0 0.0
        %392 = vmatprep.subr.mxu0 0.0
        %393 = vmatpush1.msra.mxu0 0.0
        %394 = vmatprep.subr.mxu0 0.0
        %395 = vmatpush1.msra.mxu0 0.0
        %396 = vmatprep.subr.mxu0 0.0
        %397 = vmatpush1.msra.mxu0 0.0
        %398 = vmatprep.subr.mxu0 0.0
        %399 = vmatpush1.msra.mxu0 0.0
        %400 = vmatprep.subr.mxu0 0.0
        %401 = vmatpush1.msra.mxu0 0.0
        %402 = vmatprep.subr.mxu0 0.0
        %403 = vmatpush1.msra.mxu0 0.0
        %404 = vmatprep.subr.mxu0 0.0
        %405 = vmatpush1.msra.mxu0 0.0
        %406 = vmatprep.subr.mxu0 0.0
        %407 = vmatpush1.msra.mxu0 0.0
        %408 = vmatprep.mubr.f32.mxu0 0.0
        %409 = vmatmul.mubr.f32.gmra.mrb[0].mxu0 %v271
        %v410 = vpop.f32.mrb[0].mxu0
        %v411 = vadd.f32 %v265, %v410
        %v412 = vpop.f32.mrb[0].mxu0
        %413 = vdwg.mxu0
        %v414 = vmul.f32 %v340, 0.17677669
        %v416 = vsel %vm269, %v414, 0
        %v419 = vsel %vm269, %v342, 0
        %421 = vmatprep.subr.mxu0 0.0
        %422 = vmatpush1.xpose.msra.mxu0 %v419
        %423 = vmatprep.subr.mxu0 0.0
        %424 = vmatpush1.xpose.msra.mxu0 0.0
        %425 = vmatprep.subr.mxu0 0.0
        %426 = vmatpush1.xpose.msra.mxu0 0.0
        %427 = vmatprep.subr.mxu0 0.0
        %428 = vmatpush1.xpose.msra.mxu0 0.0
        %429 = vmatprep.subr.mxu0 0.0
        %430 = vmatpush1.xpose.msra.mxu0 0.0
        %431 = vmatprep.subr.mxu0 0.0
        %432 = vmatpush1.xpose.msra.mxu0 0.0
        %433 = vmatprep.subr.mxu0 0.0
        %434 = vmatpush1.xpose.msra.mxu0 0.0
        %435 = vmatprep.subr.mxu0 0.0
        %436 = vmatpush1.xpose.msra.mxu0 0.0
        %437 = vmatprep.subr.mxu0 0.0
        %438 = vmatpush1.xpose.msra.mxu0 0.0
        %439 = vmatprep.subr.mxu0 0.0
        %440 = vmatpush1.xpose.msra.mxu0 0.0
        %441 = vmatprep.subr.mxu0 0.0
        %442 = vmatpush1.xpose.msra.mxu0 0.0
        %443 = vmatprep.subr.mxu0 0.0
        %444 = vmatpush1.xpose.msra.mxu0 0.0
        %445 = vmatprep.subr.mxu0 0.0
        %446 = vmatpush1.xpose.msra.mxu0 0.0
        %447 = vmatprep.subr.mxu0 0.0
        %448 = vmatpush1.xpose.msra.mxu0 0.0
        %449 = vmatprep.subr.mxu0 0.0
        %450 = vmatpush1.xpose.msra.mxu0 0.0
        %451 = vmatprep.subr.mxu0 0.0
        %452 = vmatpush1.xpose.msra.mxu0 0.0
        %453 = vmatprep.subr.mxu0 0.0
        %454 = vmatpush1.xpose.msra.mxu0 0.0
        %455 = vmatprep.subr.mxu0 0.0
        %456 = vmatpush1.xpose.msra.mxu0 0.0
        %457 = vmatprep.subr.mxu0 0.0
        %458 = vmatpush1.xpose.msra.mxu0 0.0
        %459 = vmatprep.subr.mxu0 0.0
        %460 = vmatpush1.xpose.msra.mxu0 0.0
        %461 = vmatprep.subr.mxu0 0.0
        %462 = vmatpush1.xpose.msra.mxu0 0.0
        %463 = vmatprep.subr.mxu0 0.0
        %464 = vmatpush1.xpose.msra.mxu0 0.0
        %465 = vmatprep.subr.mxu0 0.0
        %466 = vmatpush1.xpose.msra.mxu0 0.0
        %467 = vmatprep.subr.mxu0 0.0
        %468 = vmatpush1.xpose.msra.mxu0 0.0
        %469 = vmatprep.subr.mxu0 0.0
        %470 = vmatpush1.xpose.msra.mxu0 0.0
        %471 = vmatprep.subr.mxu0 0.0
        %472 = vmatpush1.xpose.msra.mxu0 0.0
        %473 = vmatprep.subr.mxu0 0.0
        %474 = vmatpush1.xpose.msra.mxu0 0.0
        %475 = vmatprep.subr.mxu0 0.0
        %476 = vmatpush1.xpose.msra.mxu0 0.0
        %477 = vmatprep.subr.mxu0 0.0
        %478 = vmatpush1.xpose.msra.mxu0 0.0
        %479 = vmatprep.subr.mxu0 0.0
        %480 = vmatpush1.xpose.msra.mxu0 0.0
        %481 = vmatprep.subr.mxu0 0.0
        %482 = vmatpush1.xpose.msra.mxu0 0.0
        %483 = vmatprep.subr.mxu0 0.0
        %484 = vmatpush1.xpose.msra.mxu0 0.0
        %485 = vmatprep.mubr.f32.mxu0 0.0
        %486 = vmatmul.mubr.f32.gmra.mrb[0].mxu0 %v416
        %v487 = vpop.f32.mrb[0].mxu0
        %v488 = vadd.f32 0.0, %v487
        %v489 = vpop.f32.mrb[0].mxu0
        %490 = vdwg.mxu0
        %vm491 = vcmask 64512
        %v492 = vsel %vm491, %v488, -inf
        %493 = vmax.xlane.f32.xlu0 %v492
        %v494 = vpop.xlane.xlu0 %493
        %v495 = vsub.f32 %v488, %v494
        %v496 = vmul.f32 %v495, 1.442695
        %v497 = vpow.pop %v496
        %v498 = vsel %vm491, %v497, 0.0
        %499 = vadd.xlane.f32.xlu0 %v498
        %v500 = vpop.xlane.xlu0 %499
        %v501 = vrcp.pop %v500
        %v502 = vmul.f32 %v497, %v501
        %v504 = vsel %vm491, %v502, 0
        %506 = vmatprep.subr.mxu0 0.0
        %507 = vmatpush1.msra.mxu0 %v411
        %508 = vmatprep.subr.mxu0 0.0
        %509 = vmatpush1.msra.mxu0 0.0
        %510 = vmatprep.subr.mxu0 0.0
        %511 = vmatpush1.msra.mxu0 0.0
        %512 = vmatprep.subr.mxu0 0.0
        %513 = vmatpush1.msra.mxu0 0.0
        %514 = vmatprep.subr.mxu0 0.0
        %515 = vmatpush1.msra.mxu0 0.0
        %516 = vmatprep.subr.mxu0 0.0
        %517 = vmatpush1.msra.mxu0 0.0
        %518 = vmatprep.subr.mxu0 0.0
        %519 = vmatpush1.msra.mxu0 0.0
        %520 = vmatprep.subr.mxu0 0.0
        %521 = vmatpush1.msra.mxu0 0.0
        %522 = vmatprep.subr.mxu0 0.0
        %523 = vmatpush1.msra.mxu0 0.0
        %524 = vmatprep.subr.mxu0 0.0
        %525 = vmatpush1.msra.mxu0 0.0
        %526 = vmatprep.subr.mxu0 0.0
        %527 = vmatpush1.msra.mxu0 0.0
        %528 = vmatprep.subr.mxu0 0.0
        %529 = vmatpush1.msra.mxu0 0.0
        %530 = vmatprep.subr.mxu0 0.0
        %531 = vmatpush1.msra.mxu0 0.0
        %532 = vmatprep.subr.mxu0 0.0
        %533 = vmatpush1.msra.mxu0 0.0
        %534 = vmatprep.subr.mxu0 0.0
        %535 = vmatpush1.msra.mxu0 0.0
        %536 = vmatprep.subr.mxu0 0.0
        %537 = vmatpush1.msra.mxu0 0.0
        %538 = vmatprep.subr.mxu0 0.0
        %539 = vmatpush1.msra.mxu0 0.0
        %540 = vmatprep.subr.mxu0 0.0
        %541 = vmatpush1.msra.mxu0 0.0
        %542 = vmatprep.subr.mxu0 0.0
        %543 = vmatpush1.msra.mxu0 0.0
        %544 = vmatprep.subr.mxu0 0.0
        %545 = vmatpush1.msra.mxu0 0.0
        %546 = vmatprep.subr.mxu0 0.0
        %547 = vmatpush1.msra.mxu0 0.0
        %548 = vmatprep.subr.mxu0 0.0
        %549 = vmatpush1.msra.mxu0 0.0
        %550 = vmatprep.subr.mxu0 0.0
        %551 = vmatpush1.msra.mxu0 0.0
        %552 = vmatprep.subr.mxu0 0.0
        %553 = vmatpush1.msra.mxu0 0.0
        %554 = vmatprep.subr.mxu0 0.0
        %555 = vmatpush1.msra.mxu0 0.0
        %556 = vmatprep.subr.mxu0 0.0
        %557 = vmatpush1.msra.mxu0 0.0
        %558 = vmatprep.subr.mxu0 0.0
        %559 = vmatpush1.msra.mxu0 0.0
        %560 = vmatprep.subr.mxu0 0.0
        %561 = vmatpush1.msra.mxu0 0.0
        %562 = vmatprep.subr.mxu0 0.0
        %563 = vmatpush1.msra.mxu0 0.0
        %564 = vmatprep.subr.mxu0 0.0
        %565 = vmatpush1.msra.mxu0 0.0
        %566 = vmatprep.subr.mxu0 0.0
        %567 = vmatpush1.msra.mxu0 0.0
        %568 = vmatprep.subr.mxu0 0.0
        %569 = vmatpush1.msra.mxu0 0.0
        %570 = vmatprep.mubr.f32.mxu0 0.0
        %571 = vmatmul.mubr.f32.gmra.mrb[0].mxu0 %v504
        %v572 = vpop.f32.mrb[0].mxu0
        %v573 = vadd.f32 0.0, %v572
        %v574 = vpop.f32.mrb[0].mxu0
        %575 = vdwg.mxu0
        %576 = vst.msk [vmem:[%s231] sm:$0xff] %vm269, %v573
        %577 = vst.msk [vmem:[%s238] sm:$0xff] %vm491, %v502
        %s578 = sand.u32 %s102, 1
        %s579 = scalar_lea.sflag [#allocation4], %s578
        %s580 = sand.u32 %s102, 1
        %s581 = smul.addr %s580, 8
        %s582 = scalar_lea.vmem [#allocation7], %s581
        %s583 = sand.u32 %s128, 1
        %s584 = scalar_lea.sflag [#allocation9], %s583
        %s585 = sand.u32 %s128, 1
        %s586 = smul.addr %s585, 8
        %s587 = scalar_lea.vmem [#allocation8], %s586
        // Predicated region
        $region41: #{tpu_custom_call.1} parent=31 // pred_check
          %p588 = pneg %p112
        $region42: #{tpu_custom_call.1} parent=31 // pred_check_branch
          %590 = sbr.rel (%p588) target = $region44
        $region43: #{tpu_custom_call.1} parent=31 // pred_region
          %s592 = ssub.s32 128, 128
          %593 = vsyncadd %s579, %s592
          %s594 = smul.addr %s26, 128
          %s595 = scalar_lea.hbm %s3, %s594
          %s597 = sshll.u32 %s582, 4
          %s598 = int_to_ptr.vmem [resolvable:$true] %s597
          %600 = dma.vmem_to_hbm [thread:$0]  %s598, 128, %s595, %s579
        $region44: #{tpu_custom_call.1} parent=31 // pred_fallthru
          _
        // Predicated region
        $region45: #{tpu_custom_call.1} parent=31 // pred_check
          %p601 = pneg %p138
        $region46: #{tpu_custom_call.1} parent=31 // pred_check_branch
          %603 = sbr.rel (%p601) target = $region48
        $region47: #{tpu_custom_call.1} parent=31 // pred_region
          %s605 = ssub.s32 128, 128
          %606 = vsyncadd %s584, %s605
          %s607 = smul.addr %s26, 128
          %s608 = scalar_lea.hbm %s4, %s607
          %s610 = sshll.u32 %s587, 4
          %s611 = int_to_ptr.vmem [resolvable:$true] %s610
          %613 = dma.vmem_to_hbm [thread:$0]  %s611, 128, %s608, %s584
        $region48: #{tpu_custom_call.1} parent=31 // pred_fallthru
          _
      $region32: #{tpu_custom_call.1} parent=5 // pred_fallthru
        _
      %p614 = scmp.le.s32.totalorder 2, %s21
      // Predicated region
      $region49: #{tpu_custom_call.1} parent=5 // pred_check
        %p615 = pneg %p614
      $region50: #{tpu_custom_call.1} parent=5 // pred_check_branch
        %617 = sbr.rel (%p615) target = $region52
      $region51: #{tpu_custom_call.1} parent=5 // pred_region
        %s618 = ssub.s32 %s21, 2
        // Predicated region
        $region53: #{tpu_custom_call.1} parent=51 // pred_check
          %p619 = pneg %p118
        $region54: #{tpu_custom_call.1} parent=51 // pred_check_branch
          %621 = sbr.rel (%p619) target = $region56
        $region55: #{tpu_custom_call.1} parent=51 // pred_region
          %s622 = sand.u32 %s103, 1
          %s623 = scalar_lea.sflag [#allocation4], %s622
          %s624 = sand.u32 %s103, 1
          %s625 = smul.addr %s624, 8
          %s626 = scalar_lea.vmem [#allocation7], %s625
          %627 = dma.done %s623, 128
        $region56: #{tpu_custom_call.1} parent=51 // pred_fallthru
          _
        // Predicated region
        $region57: #{tpu_custom_call.1} parent=51 // pred_check
          %p628 = pneg %p144
        $region58: #{tpu_custom_call.1} parent=51 // pred_check_branch
          %630 = sbr.rel (%p628) target = $region60
        $region59: #{tpu_custom_call.1} parent=51 // pred_region
          %s631 = sand.u32 %s129, 1
          %s632 = scalar_lea.sflag [#allocation9], %s631
          %s633 = sand.u32 %s129, 1
          %s634 = smul.addr %s633, 8
          %s635 = scalar_lea.vmem [#allocation8], %s634
          %636 = dma.done %s632, 128
        $region60: #{tpu_custom_call.1} parent=51 // pred_fallthru
          _
      $region52: #{tpu_custom_call.1} parent=5 // pred_fallthru
        _
    $region6: #{tpu_custom_call.1} parent=1 // loop_footer
      %s25 = sadd.s32 1, %s21
    $region7: #{tpu_custom_call.1} parent=1 // loop_footer_branch
      %20 = sbr.rel target = $region3
    $region8: #{tpu_custom_call.1} parent=1 // loop_exit
      _
    %637 = vsyncpa [#allocation3], 1
    %s638 = scalar_lea.sflag [#allocation3], 1
    %639 = vsyncpa %s638, 1
    %640 = vsyncpa [#allocation6], 1
    %641 = vsyncpa [#allocation4], 1
    %s642 = scalar_lea.sflag [#allocation4], 1
    %643 = vsyncpa %s642, 1
    %644 = vsyncpa [#allocation9], 1
    %s645 = scalar_lea.sflag [#allocation9], 1
    %646 = vsyncpa %s645, 1

</llo_original>
